<compile_context>
chip_gen: v7x
topology: tpu7x:2x2x1
jax: 0.10.0
libtpu: 0.0.40
codegen_flags: <defaults>
</compile_context>

<pallas_src>
import functools

import jax
import jax.numpy as jnp
from jax.experimental import pallas as pl
from jax.experimental.pallas import tpu as pltpu


def _batch_crop_kernel(mask_ref, x_ref, o_ref):
    """o = x * mask, mask broadcast from (1, tc) across the row tile."""
    o_ref[...] = x_ref[...] * mask_ref[...]


def _pick_tiles(M, HW, itemsize):
    """Row/column tile sizes for the (M, HW) slab.

    Row tiles are multiples of the dtype's sublane packing; the column tile is
    the full HW extent (lane-dense, unmasked stores) unless a minimal row-band
    would exceed the per-buffer VMEM budget, in which case it is a multiple of
    128 lanes.
    """
    pack = max(8, 32 // max(1, itemsize))      # 8 (f32) / 16 (bf16) / 32 (int8)
    budget = 8 * 1024 * 1024                   # bytes per pipelined buffer
                                               # (x2 arrays x2 buffers ≈ 32 MiB)
    rows_min = M if M <= pack else pack

    # Column tile.
    if rows_min * HW * itemsize <= budget or HW < 256:
        tc = HW                                # full-extent last dim (always legal)
    else:
        tc = max(128, (budget // (rows_min * itemsize)) // 128 * 128)
        tc = min(tc, (HW // 128) * 128)

    # Row tile.
    if M <= pack:
        tm = M                                 # full-extent second-to-last dim
    else:
        tm = max(pack, min(M, budget // (tc * itemsize)) // pack * pack)
        if M >= 4 * pack:                      # keep >= 4 grid steps (megacore)
            tm = min(tm, max(pack, (-(-M // 4)) // pack * pack))
    return tm, tc


def _make_mask(H, W, rw, start, dtype):
    """(1, H*W) mask: 1 on the wrap-around row band [start, start+rw) mod H."""
    h = jnp.arange(H, dtype=jnp.int32)
    t = h - start
    t = jnp.where(t < 0, t + H, t)             # (h - start) mod H, no integer %
    rows = (t < rw).astype(dtype)              # rw >= H degenerates to all-ones
    return jnp.broadcast_to(rows[:, None], (H, W)).reshape(1, H * W)


@functools.partial(jax.jit, static_argnames=("ratio",))
def _batch_crop_train(x_nchw, start, ratio):
    N, C, H, W = x_nchw.shape
    rw = int(ratio * W)                        # band size uses the width, as in PyTorch
    M, HW = N * C, H * W
    dtype = x_nchw.dtype
    itemsize = dtype.itemsize

    start = jnp.mod(start.astype(jnp.int32), H)       # clamp into [0, H)
    mask = _make_mask(H, W, rw, start, dtype)          # (1, HW), tiny
    x2d = x_nchw.reshape(M, HW)                        # rows = (n,c) planes, lane-dense

    tm, tc = _pick_tiles(M, HW, itemsize)
    gm, gn = pl.cdiv(M, tm), pl.cdiv(HW, tc)

    out2d = pl.pallas_call(
        _batch_crop_kernel,
        out_shape=jax.ShapeDtypeStruct((M, HW), dtype),
        # Column-tile index first so the mask block stays resident across the
        # inner row sweep (it only re-fetches when the column tile changes).
        grid=(gn, gm),
        in_specs=[
            pl.BlockSpec((1, tc), lambda j, i: (0, j)),    # mask: VMEM-resident band
            pl.BlockSpec((tm, tc), lambda j, i: (i, j)),   # x tile
        ],
        out_specs=pl.BlockSpec((tm, tc), lambda j, i: (i, j)),
        compiler_params=pltpu.CompilerParams(
            dimension_semantics=("parallel", "parallel"),
            vmem_limit_bytes=48 * 1024 * 1024,
        ),
        cost_estimate=pl.CostEstimate(
            flops=M * HW,
            transcendentals=0,
            bytes_accessed=2 * M * HW * itemsize + HW * itemsize,
        ),
    )(mask, x2d)
    return out2d.reshape(N, C, H, W)


def batch_crop(x_nchw, ratio, start=None, *, training=True):
    """Forward pass of BatchCrop. Eval mode is the identity, as in the module."""
    if not training:
        return x_nchw
    # TODO(synk): PyTorch draws `start` with host-side random.randint; here the
    # caller supplies it (drawn deterministically with jax.random in __main__).
    start = jnp.asarray(start, jnp.int32)
    return _batch_crop_train(x_nchw, start, float(ratio))


if __name__ == "__main__":
    key = jax.random.PRNGKey(0)
    N, C, H, W = 2, 4, 16, 16
    ratio = 0.5

    x = jax.random.normal(jax.random.fold_in(key, 1), (N, C, H, W), jnp.float32)
    # Deterministic stand-in for random.randint(0, H - 1).
    start = int(jax.random.randint(jax.random.fold_in(key, 2), (), 0, H))

    out_train = jax.block_until_ready(batch_crop(x, ratio, start, training=True))
    out_eval = jax.block_until_ready(batch_crop(x, ratio, training=False))

    # Pure-JAX reference of the PyTorch training-mode forward.
    rw = int(ratio * W)
    rows = ((jnp.arange(H) - start) % H) < rw
    ref = x * rows.astype(x.dtype)[None, None, :, None]

    assert out_train.shape == x.shape and out_train.dtype == x.dtype
    assert bool(jnp.allclose(out_train, ref))
    assert bool(jnp.array_equal(out_eval, x))
    assert bool(jnp.all(jnp.isfinite(out_train)))
    print("KERNEL_OK")
</pallas_src>

<mosaic_0001>
module attributes {stable_mosaic.version = 11 : i64} {
  func.func @_batch_crop_kernel(%arg0: i32, %arg1: i32, %arg2: memref<1x256xf32, #tpu.memory_space<vmem>>, %arg3: memref<8x256xf32, #tpu.memory_space<vmem>>, %arg4: memref<8x256xf32, #tpu.memory_space<vmem>>) attributes {dimension_semantics = [#tpu.dimension_semantics<parallel>, #tpu.dimension_semantics<parallel>], iteration_bounds = array<i64: 1, 1>, scalar_prefetch = 0 : i64, scratch_operands = 0 : i64, tpu.core_type = #tpu.core_type<tc>, window_params = [{transform_indices = @transform_0, window_bounds = array<i64: 1, 256>}, {transform_indices = @transform_1, window_bounds = array<i64: 8, 256>}, {transform_indices = @transform_2, window_bounds = array<i64: 8, 256>}]} {
    %c0 = arith.constant 0 : index
    %c0_0 = arith.constant 0 : index
    %0 = vector.load %arg3[%c0, %c0_0] : memref<8x256xf32, #tpu.memory_space<vmem>>, vector<8x256xf32>
    %c0_1 = arith.constant 0 : index
    %c0_2 = arith.constant 0 : index
    %1 = vector.load %arg2[%c0_1, %c0_2] : memref<1x256xf32, #tpu.memory_space<vmem>>, vector<1x256xf32>
    %2 = vector.broadcast %1 : vector<1x256xf32> to vector<8x256xf32>
    %3 = arith.mulf %0, %2 : vector<8x256xf32>
    %c0_3 = arith.constant 0 : index
    %c0_4 = arith.constant 0 : index
    %4 = vector.load %arg4[%c0_3, %c0_4] : memref<8x256xf32, #tpu.memory_space<vmem>>, vector<8x256xf32>
    tpu.vector_store %arg4[%c0_3, %c0_4], %3 {strides = array<i32>} : memref<8x256xf32, #tpu.memory_space<vmem>>, vector<8x256xf32>,
    return
  }
  func.func @transform_0(%arg0: i32, %arg1: i32) -> (i32, i32) {
    %c0_i32 = arith.constant 0 : i32
    %c0_i32_0 = arith.constant 0 : i32
    return %c0_i32, %arg0 : i32, i32
  }
  func.func @transform_1(%arg0: i32, %arg1: i32) -> (i32, i32) {
    %c0_i32 = arith.constant 0 : i32
    return %arg1, %arg0 : i32, i32
  }
  func.func @transform_2(%arg0: i32, %arg1: i32) -> (i32, i32) {
    %c0_i32 = arith.constant 0 : i32
    return %arg1, %arg0 : i32, i32
  }
}

</mosaic_0001>

<llo_original>
// kernel: _batch_crop_train.1
$region0: #{_batch_crop_train.1}
  #allocation0 [shape = 'u32[]', space=smem, size = 0x4, offset = 0x4, fixed_abs, tag = 'smem constant byte address 0x4 - core index']
  #allocation1 [shape = 'u32[144,128]{1,0:T(1,128)}', space=vmem, size = 0x12000, scoped, tag = 'internal scratch']
  %s0 = inlined_call_operand.vmem [shape: f32[1,256], index: 0, kind: input, shape index: {}]
  %s1 = inlined_call_operand.vmem [shape: f32[8,256], index: 1, kind: input, shape index: {}]
  %s2 = inlined_call_operand.vmem [shape: f32[8,256], index: 2, kind: output, shape index: {}]
  %s3 = sld [smem:[#allocation0]]
  $region18: #{_batch_crop_train.1} parent=0
    _
  %s5 = ssub.s32 1, %s3
  %s6 = scalar_select 0, %s5, %s3
  // Predicated region
  $region2: #{_batch_crop_train.1} parent=0 // pred_check
    _
  $region3: #{_batch_crop_train.1} parent=0 // pred_check_branch
    %8 = sbr.rel (0) target = $region5
  $region4: #{_batch_crop_train.1} parent=0 // pred_region
    _
  $region5: #{_batch_crop_train.1} parent=0 // pred_fallthru
    _
  // Predicated region
  $region6: #{_batch_crop_train.1} parent=0 // pred_check
    _
  $region7: #{_batch_crop_train.1} parent=0 // pred_check_branch
    %10 = sbr.rel (0) target = $region9
  $region8: #{_batch_crop_train.1} parent=0 // pred_region
    _
  $region9: #{_batch_crop_train.1} parent=0 // pred_fallthru
    _
  %v11 = vld [vmem:[%s1] sm:$0xff]
  %v12 = vld [vmem:[%s1 + $0x8] sm:$0xff]
  %v13 = vld [vmem:[%s0] sm:$0x3]
  %v15 = vlaneseq
  %v16 = vshrl.u32 %v15, 7
  %v17 = vsub.s32 0, %v16
  %v18 = vrot.slane %v13, %v17
  %v19 = vlaneseq
  %v20 = vshrl.u32 %v19, 7
  %v21 = vsub.s32 1, %v20
  %v22 = vrot.slane %v13, %v21
  %v25 = vmul.f32 %v11, %v18
  %v26 = vmul.f32 %v12, %v22
  %27 = vst [vmem:[%s2] sm:$0xff] %v25
  %28 = vst [vmem:[%s2 + $0x8] sm:$0xff] %v26
  // Predicated region
  $region10: #{_batch_crop_train.1} parent=0 // pred_check
    _
  $region11: #{_batch_crop_train.1} parent=0 // pred_check_branch
    %30 = sbr.rel (0) target = $region13
  $region12: #{_batch_crop_train.1} parent=0 // pred_region
    _
  $region13: #{_batch_crop_train.1} parent=0 // pred_fallthru
    _
  // Predicated region
  $region14: #{_batch_crop_train.1} parent=0 // pred_check
    _
  $region15: #{_batch_crop_train.1} parent=0 // pred_check_branch
    %32 = sbr.rel (0) target = $region17
  $region16: #{_batch_crop_train.1} parent=0 // pred_region
    _
  $region17: #{_batch_crop_train.1} parent=0 // pred_fallthru
    _

</llo_original>
